<compile_context>
chip_gen: v5e
topology: v5e:2x2
jax: 0.10.0
libtpu: 0.0.40
codegen_flags: <defaults>
</compile_context>

<pallas_src>
import jax
import jax.numpy as jnp
from jax.experimental import pallas as pl
from jax.experimental.pallas import tpu as pltpu


def _round_up(x: int, m: int) -> int:
    return ((x + m - 1) // m) * m


def _pick_vmem_limit_bytes() -> int:
    """Per-generation scoped-VMEM limit (leave headroom below physical)."""
    cap = 64 * 1024 * 1024  # conservative fallback (v7x physical)
    try:
        info = pltpu.get_tpu_info()
        cap = int(getattr(info, "vmem_capacity_bytes", cap))
    except Exception:
        pass
    # headroom for Mosaic internal scratch; never below 32 MiB, never above 100 MiB
    return int(min(max(cap - 8 * 1024 * 1024, 32 * 1024 * 1024), 100 * 1024 * 1024))


def _make_lbad_kernel(activ: str, use_scratch: bool):
    """Tiled matmul kernel: grid = (M, N, K); K is the reduction axis."""

    def _epilogue(acc_f32, b_row):
        y = acc_f32 + b_row  # bias broadcast over the batch rows
        if activ == "relu":
            y = jnp.maximum(y, 0.0)
        elif activ == "tanh":
            y = jnp.tanh(y)
        elif activ == "sigmoid":
            y = jax.nn.sigmoid(y)
        elif activ == "identity":
            pass
        return y

    if use_scratch:
        # Output dtype narrower than f32: keep a f32 VMEM accumulator.
        def kernel(x_ref, w_ref, b_ref, o_ref, acc_ref):
            # x_ref: (tm, tk)   w_ref: (tk, tn) [pre-transposed W]   b_ref: (1, tn)
            k = pl.program_id(2)
            partial = jnp.dot(x_ref[...], w_ref[...],
                              preferred_element_type=jnp.float32)

            @pl.when(k == 0)
            def _():
                acc_ref[...] = partial          # direct write, no zero+add pass

            @pl.when(k > 0)
            def _():
                acc_ref[...] += partial

            @pl.when(k == pl.num_programs(2) - 1)
            def _():
                o_ref[...] = _epilogue(acc_ref[...],
                                       b_ref[...].astype(jnp.float32)
                                       ).astype(o_ref.dtype)

        return kernel

    # f32 output: accumulate directly into the resident output block.
    def kernel(x_ref, w_ref, b_ref, o_ref):
        k = pl.program_id(2)
        partial = jnp.dot(x_ref[...], w_ref[...],
                          preferred_element_type=jnp.float32)

        @pl.when(k == 0)
        def _():
            o_ref[...] = partial

        @pl.when(k > 0)
        def _():
            o_ref[...] += partial

        @pl.when(k == pl.num_programs(2) - 1)
        def _():
            o_ref[...] = _epilogue(o_ref[...],
                                   b_ref[...].astype(jnp.float32)
                                   ).astype(o_ref.dtype)

    return kernel


class LBADPallas:
    """LBAD default config (Linear -> activation) with params prepared once."""

    def __init__(self, weight, bias, *, activ: str = "relu",
                 drop_rate: float = 0.0, use_bn: bool = False, use_wn: bool = False,
                 operand_dtype=None, tn: int = 512, tk: int = 1024, tm: int = 512):
        if use_bn or use_wn or drop_rate > 0.0:
            # TODO(synk): BN / weight_norm / dropout branches not implemented in-kernel.
            raise NotImplementedError(
                "Only the default LBAD config (Linear -> activation) is implemented.")
        if activ not in ("relu", "tanh", "sigmoid", "identity"):
            raise NotImplementedError(activ)

        self.activ = activ
        OUT, IN = weight.shape
        self.out_features, self.in_features = OUT, IN

        self.operand_dtype = jnp.dtype(operand_dtype) if operand_dtype is not None \
            else jnp.dtype(weight.dtype)
        # min sublane tile: 8 for 32-bit operands, 16 for 16-bit (bf16 packing)
        self.sublane = 16 if self.operand_dtype.itemsize == 2 else 8
        self.tm_max = tm

        # N / K tiles are fixed at init so the weight can be padded once.
        self.tn = min(tn, _round_up(OUT, 128))
        self.tk = min(tk, _round_up(IN, 128))
        self.OUTp = _round_up(OUT, self.tn)
        self.INp = _round_up(IN, self.tk)

        # Pad + cast + pre-transpose the weight ONCE: (OUT, IN) -> (INp, OUTp).
        w = weight.astype(self.operand_dtype)
        if self.OUTp != OUT or self.INp != IN:
            w = jnp.pad(w, ((0, self.OUTp - OUT), (0, self.INp - IN)))
        self.weight_t = jnp.asarray(w.T)                     # (INp, OUTp)
        b = bias.astype(jnp.float32)
        if self.OUTp != OUT:
            b = jnp.pad(b, (0, self.OUTp - OUT))
        self.bias = b.reshape(1, self.OUTp)                  # (1, OUTp)

        self._vmem_limit = _pick_vmem_limit_bytes()

    def __call__(self, x):
        B, IN = x.shape
        assert IN == self.in_features, "input feature mismatch"
        out_dtype = x.dtype

        xo = x.astype(self.operand_dtype)

        # M tile per call (depends on B); N/K tiles fixed at init.
        tm = min(self.tm_max, _round_up(B, self.sublane))
        Bp = _round_up(B, tm)
        tn, tk = self.tn, self.tk
        grid_m = Bp // tm

        # v7x megacore: if only one i-block, try to give the j axis >= 2 blocks
        # (halving keeps tn a 128-multiple and keeps OUTp divisible by tn).
        while grid_m == 1 and (self.OUTp // tn) < 2 and tn % 256 == 0:
            tn //= 2
        grid_n = self.OUTp // tn
        grid_k = self.INp // tk

        if Bp != B or self.INp != IN:
            xp = jnp.pad(xo, ((0, Bp - B), (0, self.INp - IN)))
        else:
            xp = xo

        use_scratch = (jnp.dtype(out_dtype) != jnp.dtype(jnp.float32))
        scratch = [pltpu.VMEM((tm, tn), jnp.float32)] if use_scratch else []

        out = pl.pallas_call(
            _make_lbad_kernel(self.activ, use_scratch),
            out_shape=jax.ShapeDtypeStruct((Bp, self.OUTp), out_dtype),
            grid=(grid_m, grid_n, grid_k),
            in_specs=[
                pl.BlockSpec((tm, tk), lambda i, j, k: (i, k)),   # x  (Bp, INp)
                pl.BlockSpec((tk, tn), lambda i, j, k: (k, j)),   # W^T (INp, OUTp)
                pl.BlockSpec((1, tn), lambda i, j, k: (0, j)),    # bias (k-independent)
            ],
            out_specs=pl.BlockSpec((tm, tn), lambda i, j, k: (i, j)),
            scratch_shapes=scratch,
            compiler_params=pltpu.CompilerParams(
                dimension_semantics=("parallel", "parallel", "arbitrary"),
                vmem_limit_bytes=self._vmem_limit,
            ),
        )(xp, self.weight_t, self.bias)

        if Bp != B or self.OUTp != self.out_features:
            out = out[:B, :self.out_features]
        return out


def lbad_forward(x, weight, bias, *, activ: str = "relu"):
    """One-shot convenience wrapper (params prepared per call)."""
    return LBADPallas(weight, bias, activ=activ)(x)


if __name__ == "__main__":
    # Small shapes consistent with the module: batch=8, in_features=32, out_features=64
    B, IN, OUT = 8, 32, 64

    key = jax.random.PRNGKey(0)
    kx, kw, kb = jax.random.split(key, 3)

    # Deterministic parameter init mimicking nn.Linear's uniform(-1/sqrt(IN), 1/sqrt(IN))
    bound = 1.0 / (IN ** 0.5)
    weight = jax.random.uniform(kw, (OUT, IN), jnp.float32, minval=-bound, maxval=bound)
    bias = jax.random.uniform(kb, (OUT,), jnp.float32, minval=-bound, maxval=bound)
    x = jax.random.normal(kx, (B, IN), jnp.float32)

    lbad = LBADPallas(weight, bias, activ="relu")   # weight padded/transposed once here
    y = jax.block_until_ready(lbad(x))

    # Reference check in plain JAX (same semantics as the PyTorch module default config)
    y_ref = jnp.maximum(x @ weight.T + bias, 0.0)
    assert y.shape == (B, OUT)
    assert jnp.allclose(y, y_ref, atol=1e-5, rtol=1e-5)

    print("KERNEL_OK")
</pallas_src>

<mosaic_0001>
module attributes {stable_mosaic.version = 11 : i64} {
  func.func @kernel(%arg0: i32, %arg1: i32, %arg2: i32, %arg3: memref<8x128xf32, #tpu.memory_space<vmem>>, %arg4: memref<128x128xf32, #tpu.memory_space<vmem>>, %arg5: memref<1x128xf32, #tpu.memory_space<vmem>>, %arg6: memref<8x128xf32, #tpu.memory_space<vmem>>) attributes {dimension_semantics = [#tpu.dimension_semantics<parallel>, #tpu.dimension_semantics<parallel>, #tpu.dimension_semantics<arbitrary>], iteration_bounds = array<i64: 1, 1, 1>, scalar_prefetch = 0 : i64, scratch_operands = 0 : i64, tpu.core_type = #tpu.core_type<tc>, window_params = [{transform_indices = @transform_0, window_bounds = array<i64: 8, 128>}, {transform_indices = @transform_1, window_bounds = array<i64: 128, 128>}, {transform_indices = @transform_2, window_bounds = array<i64: 1, 128>}, {transform_indices = @transform_3, window_bounds = array<i64: 8, 128>}]} {
    %c0 = arith.constant 0 : index
    %c0_0 = arith.constant 0 : index
    %0 = vector.load %arg3[%c0, %c0_0] : memref<8x128xf32, #tpu.memory_space<vmem>>, vector<8x128xf32>
    %c0_1 = arith.constant 0 : index
    %c0_2 = arith.constant 0 : index
    %1 = vector.load %arg4[%c0_1, %c0_2] : memref<128x128xf32, #tpu.memory_space<vmem>>, vector<128x128xf32>
    %cst = arith.constant dense<0.000000e+00> : vector<8x128xf32>
    %2 = tpu.matmul %0, %1, %cst {dimension_numbers = #tpu.dot_dimension_numbers<[1], [0], [0], [1], [0, 0, 1, 1], [], []>} : vector<8x128xf32>, vector<128x128xf32>, vector<8x128xf32> -> vector<8x128xf32>
    %c0_i32 = arith.constant 0 : i32
    %3 = arith.cmpi eq, %arg2, %c0_i32 : i32
    %4 = arith.extui %3 : i1 to i32
    %c0_i32_3 = arith.constant 0 : i32
    %5 = arith.cmpi ne, %4, %c0_i32_3 : i32
    scf.if %5 {
      %c0_8 = arith.constant 0 : index
      %c0_9 = arith.constant 0 : index
      %12 = vector.load %arg6[%c0_8, %c0_9] : memref<8x128xf32, #tpu.memory_space<vmem>>, vector<8x128xf32>
      tpu.vector_store %arg6[%c0_8, %c0_9], %2 {strides = array<i32>} : memref<8x128xf32, #tpu.memory_space<vmem>>, vector<8x128xf32>,
    } else {
    }
    %c0_i32_4 = arith.constant 0 : i32
    %6 = arith.cmpi sgt, %arg2, %c0_i32_4 : i32
    %7 = arith.extui %6 : i1 to i32
    %c0_i32_5 = arith.constant 0 : i32
    %8 = arith.cmpi ne, %7, %c0_i32_5 : i32
    scf.if %8 {
      %c0_8 = arith.constant 0 : index
      %c0_9 = arith.constant 0 : index
      %12 = vector.load %arg6[%c0_8, %c0_9] : memref<8x128xf32, #tpu.memory_space<vmem>>, vector<8x128xf32>
      %13 = arith.addf %12, %2 : vector<8x128xf32>
      %c0_10 = arith.constant 0 : index
      %c0_11 = arith.constant 0 : index
      %14 = vector.load %arg6[%c0_10, %c0_11] : memref<8x128xf32, #tpu.memory_space<vmem>>, vector<8x128xf32>
      tpu.vector_store %arg6[%c0_10, %c0_11], %13 {strides = array<i32>} : memref<8x128xf32, #tpu.memory_space<vmem>>, vector<8x128xf32>,
    } else {
    }
    %c0_i32_6 = arith.constant 0 : i32
    %9 = arith.cmpi eq, %arg2, %c0_i32_6 : i32
    %10 = arith.extui %9 : i1 to i32
    %c0_i32_7 = arith.constant 0 : i32
    %11 = arith.cmpi ne, %10, %c0_i32_7 : i32
    scf.if %11 {
      %c0_8 = arith.constant 0 : index
      %c0_9 = arith.constant 0 : index
      %12 = vector.load %arg6[%c0_8, %c0_9] : memref<8x128xf32, #tpu.memory_space<vmem>>, vector<8x128xf32>
      %c0_10 = arith.constant 0 : index
      %c0_11 = arith.constant 0 : index
      %13 = vector.load %arg5[%c0_10, %c0_11] : memref<1x128xf32, #tpu.memory_space<vmem>>, vector<1x128xf32>
      %14 = vector.broadcast %13 : vector<1x128xf32> to vector<8x128xf32>
      %15 = arith.addf %12, %14 : vector<8x128xf32>
      %cst_12 = arith.constant 0.000000e+00 : f32
      %16 = vector.broadcast %cst_12 : f32 to vector<8x128xf32>
      %17 = arith.maximumf %15, %16 : vector<8x128xf32>
      %c0_13 = arith.constant 0 : index
      %c0_14 = arith.constant 0 : index
      %18 = vector.load %arg6[%c0_13, %c0_14] : memref<8x128xf32, #tpu.memory_space<vmem>>, vector<8x128xf32>
      tpu.vector_store %arg6[%c0_13, %c0_14], %17 {strides = array<i32>} : memref<8x128xf32, #tpu.memory_space<vmem>>, vector<8x128xf32>,
    } else {
    }
    return
  }
  func.func @transform_0(%arg0: i32, %arg1: i32, %arg2: i32) -> (i32, i32) {
    %c0_i32 = arith.constant 0 : i32
    return %arg0, %arg2 : i32, i32
  }
  func.func @transform_1(%arg0: i32, %arg1: i32, %arg2: i32) -> (i32, i32) {
    %c0_i32 = arith.constant 0 : i32
    return %arg2, %arg1 : i32, i32
  }
  func.func @transform_2(%arg0: i32, %arg1: i32, %arg2: i32) -> (i32, i32) {
    %c0_i32 = arith.constant 0 : i32
    %c0_i32_0 = arith.constant 0 : i32
    return %c0_i32, %arg1 : i32, i32
  }
  func.func @transform_3(%arg0: i32, %arg1: i32, %arg2: i32) -> (i32, i32) {
    %c0_i32 = arith.constant 0 : i32
    return %arg0, %arg1 : i32, i32
  }
}

</mosaic_0001>

<llo_original>
// kernel: tpu_custom_call.1
$region0: #{tpu_custom_call.1}
  #allocation0 [shape = 'u32[]', space=smem, size = 0x4, offset = 0x4, fixed_abs, tag = 'smem constant byte address 0x4 - core index']
  #allocation1 [shape = 'u32[72,128]{1,0:T(1,128)}', space=vmem, size = 0x9000, scoped, tag = 'internal scratch']
  %s0 = inlined_call_operand.hbm [shape: f32[8,128], index: 0, kind: input, shape index: {}]
  %s1 = inlined_call_operand.hbm [shape: f32[128,128], index: 1, kind: input, shape index: {}]
  %s2 = inlined_call_operand.vmem [shape: f32[1,128], index: 2, kind: input, shape index: {}]
  %s3 = inlined_call_operand.hbm [shape: f32[8,128], index: 3, kind: output, shape index: {}]
  %s4 = sld [smem:[#allocation0]]
  $region42: #{tpu_custom_call.1} parent=0
    _
  %s6 = ssub.s32 1, %s4
  %s7 = scalar_select 0, %s6, %s4
  $region1: #{tpu_custom_call.1} parent=0
    #allocation2 [shape = 'u8[4096]{0}', space=vmem, size = 0x1000, scoped, tag = 'input window, operand 0, single buffered']
    #allocation3 [shape = 's32[1]{0}', space=sflag, size = 0x4, scoped, tag = 'scoped memory for tpu_custom_call.1']
    #allocation4 [shape = 's32[1]{0}', space=sflag, size = 0x4, scoped, tag = 'scoped memory for tpu_custom_call.1']
    #allocation5 [shape = 'u8[65536]{0}', space=vmem, size = 0x10000, scoped, tag = 'input window, operand 1, single buffered']
    #allocation6 [shape = 's32[1]{0}', space=sflag, size = 0x4, scoped, tag = 'scoped memory for tpu_custom_call.1']
    #allocation7 [shape = 'u8[4096]{0}', space=vmem, size = 0x1000, scoped, tag = 'output window, operand 0, single buffered']
    %8 = vsyncpa [#allocation3], 0
    %9 = vsyncpa [#allocation6], 0
    %10 = vsyncpa [#allocation4], 0
    // Predicated region
    $region2: #{tpu_custom_call.1} parent=1 // pred_check
      _
    $region3: #{tpu_custom_call.1} parent=1 // pred_check_branch
      %12 = sbr.rel (0) target = $region5
    $region4: #{tpu_custom_call.1} parent=1 // pred_region
      %14 = vsyncadd [#allocation3], 0
      %s16 = sshll.u32 %s0, 4
      %s17 = int_to_ptr.hbm [resolvable:$true] %s16
      %s18 = sshll.u32 [#allocation2], 4
      %s19 = int_to_ptr.vmem [resolvable:$true] %s18
      %21 = dma.hbm_to_vmem [thread:$0]  %s17, 128, %s19, [#allocation3]
    $region5: #{tpu_custom_call.1} parent=1 // pred_fallthru
      _
    // Predicated region
    $region6: #{tpu_custom_call.1} parent=1 // pred_check
      _
    $region7: #{tpu_custom_call.1} parent=1 // pred_check_branch
      %23 = sbr.rel (0) target = $region9
    $region8: #{tpu_custom_call.1} parent=1 // pred_region
      %25 = vsyncadd [#allocation6], 0
      %s26 = sshll.u32 %s1, 4
      %s27 = int_to_ptr.hbm [resolvable:$true] %s26
      %s28 = sshll.u32 [#allocation5], 4
      %s29 = int_to_ptr.vmem [resolvable:$true] %s28
      %34 = dma.hbm_to_vmem [thread:$0]  %s27, 2048, %s29, [#allocation6], 128, 128, 8
    $region9: #{tpu_custom_call.1} parent=1 // pred_fallthru
      _
    // Predicated region
    $region10: #{tpu_custom_call.1} parent=1 // pred_check
      _
    $region11: #{tpu_custom_call.1} parent=1 // pred_check_branch
      %36 = sbr.rel (0) target = $region13
    $region12: #{tpu_custom_call.1} parent=1 // pred_region
      _
    $region13: #{tpu_custom_call.1} parent=1 // pred_fallthru
      _
    // Predicated region
    $region14: #{tpu_custom_call.1} parent=1 // pred_check
      _
    $region15: #{tpu_custom_call.1} parent=1 // pred_check_branch
      %38 = sbr.rel (0) target = $region17
    $region16: #{tpu_custom_call.1} parent=1 // pred_region
      %40 = dma.done [#allocation3], 128
    $region17: #{tpu_custom_call.1} parent=1 // pred_fallthru
      _
    // Predicated region
    $region18: #{tpu_custom_call.1} parent=1 // pred_check
      _
    $region19: #{tpu_custom_call.1} parent=1 // pred_check_branch
      %42 = sbr.rel (0) target = $region21
    $region20: #{tpu_custom_call.1} parent=1 // pred_region
      %44 = dma.done [#allocation6], 2048
    $region21: #{tpu_custom_call.1} parent=1 // pred_fallthru
      _
    %v45 = vld [vmem:[#allocation2] sm:$0xff]
    %v46 = vld [vmem:[#allocation5] sm:$0xff]
    %v47 = vld [vmem:[#allocation5 + $0x8] sm:$0xff]
    %v48 = vld [vmem:[#allocation5 + $0x10] sm:$0xff]
    %v49 = vld [vmem:[#allocation5 + $0x18] sm:$0xff]
    %v50 = vld [vmem:[#allocation5 + $0x20] sm:$0xff]
    %v51 = vld [vmem:[#allocation5 + $0x28] sm:$0xff]
    %v52 = vld [vmem:[#allocation5 + $0x30] sm:$0xff]
    %v53 = vld [vmem:[#allocation5 + $0x38] sm:$0xff]
    %v54 = vld [vmem:[#allocation5 + $0x40] sm:$0xff]
    %v55 = vld [vmem:[#allocation5 + $0x48] sm:$0xff]
    %v56 = vld [vmem:[#allocation5 + $0x50] sm:$0xff]
    %v57 = vld [vmem:[#allocation5 + $0x58] sm:$0xff]
    %v58 = vld [vmem:[#allocation5 + $0x60] sm:$0xff]
    %v59 = vld [vmem:[#allocation5 + $0x68] sm:$0xff]
    %v60 = vld [vmem:[#allocation5 + $0x70] sm:$0xff]
    %v61 = vld [vmem:[#allocation5 + $0x78] sm:$0xff]
    %62 = vmatpush.msra.mxu0 %v61
    %63 = vmatpush.msra.mxu0 %v60
    %64 = vmatpush.msra.mxu0 %v59
    %65 = vmatpush.msra.mxu0 %v58
    %66 = vmatpush.msra.mxu0 %v57
    %67 = vmatpush.msra.mxu0 %v56
    %68 = vmatpush.msra.mxu0 %v55
    %69 = vmatpush.msra.mxu0 %v54
    %70 = vmatpush.msra.mxu0 %v53
    %71 = vmatpush.msra.mxu0 %v52
    %72 = vmatpush.msra.mxu0 %v51
    %73 = vmatpush.msra.mxu0 %v50
    %74 = vmatpush.msra.mxu0 %v49
    %75 = vmatpush.msra.mxu0 %v48
    %76 = vmatpush.msra.mxu0 %v47
    %77 = vmatpush.msra.mxu0 %v46
    %78 = vmatmul.f32.gmra.mxu0 %v45
    %v79 = vpop.f32.mrf.mxu0
    %v80 = vadd.f32 0.0, %v79
    %81 = vdwg.mxu0
    %p82 = scmp.eq.s32.totalorder 0, 0
    // Predicated region
    $region22: #{tpu_custom_call.1} parent=1 // pred_check
      %p83 = pneg %p82
    $region23: #{tpu_custom_call.1} parent=1 // pred_check_branch
      %85 = sbr.rel (%p83) target = $region25
    $region24: #{tpu_custom_call.1} parent=1 // pred_region
      %86 = vst [vmem:[#allocation7] sm:$0xff] %v80
    $region25: #{tpu_custom_call.1} parent=1 // pred_fallthru
      _
    %p87 = scmp.gt.s32.totalorder 0, 0
    // Predicated region
    $region26: #{tpu_custom_call.1} parent=1 // pred_check
      %p88 = pneg %p87
    $region27: #{tpu_custom_call.1} parent=1 // pred_check_branch
      %90 = sbr.rel (%p88) target = $region29
    $region28: #{tpu_custom_call.1} parent=1 // pred_region
      %v91 = vld [vmem:[#allocation7] sm:$0xff]
      %v92 = vadd.f32 %v91, %v80
      %93 = vst [vmem:[#allocation7] sm:$0xff] %v92
    $region29: #{tpu_custom_call.1} parent=1 // pred_fallthru
      _
    // Predicated region
    $region30: #{tpu_custom_call.1} parent=1 // pred_check
      %p94 = pneg %p82
    $region31: #{tpu_custom_call.1} parent=1 // pred_check_branch
      %96 = sbr.rel (%p94) target = $region33
    $region32: #{tpu_custom_call.1} parent=1 // pred_region
      %v97 = vld [vmem:[#allocation7] sm:$0xff]
      %v98 = vld [vmem:[%s2] sm:$0x1]
      %v100 = vperm.slane %v98, 0
      %v102 = vadd.f32 %v97, %v100
      %v103 = vmax.f32 %v102, 0.0
      %104 = vst [vmem:[#allocation7] sm:$0xff] %v103
    $region33: #{tpu_custom_call.1} parent=1 // pred_fallthru
      _
    // Predicated region
    $region34: #{tpu_custom_call.1} parent=1 // pred_check
      _
    $region35: #{tpu_custom_call.1} parent=1 // pred_check_branch
      %106 = sbr.rel (0) target = $region37
    $region36: #{tpu_custom_call.1} parent=1 // pred_region
      %108 = vsyncadd [#allocation4], 0
      %s110 = sshll.u32 [#allocation7], 4
      %s111 = int_to_ptr.vmem [resolvable:$true] %s110
      %s112 = sshll.u32 %s3, 4
      %s113 = int_to_ptr.hbm [resolvable:$true] %s112
      %115 = dma.vmem_to_hbm [thread:$0]  %s111, 128, %s113, [#allocation4]
    $region37: #{tpu_custom_call.1} parent=1 // pred_fallthru
      _
    // Predicated region
    $region38: #{tpu_custom_call.1} parent=1 // pred_check
      _
    $region39: #{tpu_custom_call.1} parent=1 // pred_check_branch
      %117 = sbr.rel (0) target = $region41
    $region40: #{tpu_custom_call.1} parent=1 // pred_region
      %119 = dma.done [#allocation4], 128
    $region41: #{tpu_custom_call.1} parent=1 // pred_fallthru
      _
    %120 = vsyncpa [#allocation3], 1
    %121 = vsyncpa [#allocation6], 1
    %122 = vsyncpa [#allocation4], 1

</llo_original>
